<compile_context>
chip_gen: v5e
topology: v5e:2x2
jax: 0.10.0
libtpu: 0.0.40
codegen_flags: <defaults>
</compile_context>

<pallas_src>
import functools

import jax
import jax.numpy as jnp
from jax import lax
from jax.experimental import pallas as pl
from jax.experimental.pallas import tpu as pltpu

LANES = 128
SUBLANES = 8
MAX_BLOCK_ROWS = 4096       # (4096,128) f32 = 2 MiB/input/step; 8 MiB pipelined
NEG_FILL = -30.0            # sigmoid(-30) ~ 9e-14: lane-pad elements contribute ~0
LOG_EPS_P = -27.631021      # log(1e-12)  (reference clamp for log(p + 1e-12))
LOG_EPS_1MP = -16.118095    # log(1e-7)   (reference clamp for log(1-p + 1e-7))


def _cdiv(a, b):
    return -(-a // b)


def _loss_sums_kernel(pred_ref, mask_ref, out_ref, *, alpha, rows_total):
    """Accumulate the four global sums needed by FocalDiceloss_IoULoss.

    out_ref block: (1, 4, acc_sub, 128) f32, resident across the reduction axis.
      slot 0: sum(sigmoid(pred) * mask)   (intersection)
      slot 1: sum(sigmoid(pred))
      slot 2: sum(mask)
      slot 3: sum(focal_pos + focal_neg)  (unnormalized focal numerator)
    """
    c = pl.program_id(0)
    i = pl.program_id(1)
    steps = pl.num_programs(1)
    br = pred_ref.shape[0]          # static block rows
    acc_sub = out_ref.shape[2]      # static: 8 (vreg accumulators) or 1 (tiny case)

    @pl.when(i == 0)
    def _():
        out_ref[...] = jnp.zeros_like(out_ref)

    # Stream native dtype (f32 / bf16), upcast on the VPU; accumulate in f32.
    x = pred_ref[...].astype(jnp.float32)
    m = mask_ref[...].astype(jnp.float32)

    # --- log-sigmoid / softplus reformulation: 3 EUP ops per element ---------
    ax = jnp.abs(x)
    e = jnp.exp(-ax)                         # EUP, e in (0, 1]
    one_p_e = 1.0 + e
    lp = jnp.log(one_p_e)                    # EUP, = softplus(-|x|)
    r = 1.0 / one_p_e                        # EUP (exact reciprocal)
    p = jnp.where(x >= 0.0, r, e * r)        # sigmoid(x), exact
    one_m_p = 1.0 - p

    # log(sigmoid(x)) = -softplus(-x), log(1-sigmoid(x)) = -softplus(x);
    # clamp so saturated logits match the reference's eps-in-log behaviour.
    log_p = jnp.maximum(-(jnp.maximum(-x, 0.0) + lp), LOG_EPS_P)
    log_1mp = jnp.maximum(-(jnp.maximum(x, 0.0) + lp), LOG_EPS_1MP)

    pm = p * m
    loss_pos = (-alpha) * m * (one_m_p * one_m_p) * log_p          # gamma == 2
    loss_neg = (alpha - 1.0) * (1.0 - m) * (p * p) * log_1mp
    focal = loss_pos + loss_neg

    def vsum(a):
        # VALU-only strided reduce to a single (8,128) vreg; no XLU.
        if acc_sub == SUBLANES and br % SUBLANES == 0:
            return jnp.sum(a.reshape(br // SUBLANES, SUBLANES, LANES), axis=0)
        return jnp.sum(a, axis=0, keepdims=True)

    def accumulate(pm_, p_, m_, f_):
        out_ref[0, 0] += vsum(pm_)
        out_ref[0, 1] += vsum(p_)
        out_ref[0, 2] += vsum(m_)
        out_ref[0, 3] += vsum(f_)

    # Logical first row of this block (independent of any index_map clamping).
    row0 = (c * steps + i) * br
    is_full = row0 + br <= rows_total

    @pl.when(is_full)
    def _():
        accumulate(pm, p, m, focal)

    @pl.when(jnp.logical_not(is_full))
    def _():
        # Tail / duplicate block: select valid rows (where, not multiply, so
        # undefined data in the out-of-bounds region cannot produce NaN*0).
        rid = lax.broadcasted_iota(jnp.int32, (br, LANES), 0)
        valid = (row0 + rid) < rows_total
        zero = jnp.zeros_like(pm)
        accumulate(jnp.where(valid, pm, zero),
                   jnp.where(valid, p, zero),
                   jnp.where(valid, m, zero),
                   jnp.where(valid, focal, zero))


def focal_dice_iou_loss(pred, mask, pred_iou, *, weight=20.0, iou_scale=1.0,
                        smooth=1.0, gamma=2.0, alpha=0.25,
                        max_block_rows=MAX_BLOCK_ROWS):
    assert pred.shape == mask.shape, 'pred and mask should have the same shape.'
    assert gamma == 2.0, 'kernel hard-codes gamma == 2 (the module default)'

    total = pred.size                                  # static

    # Stream native f32/bf16; only non-float inputs (bool/int masks) get cast.
    if pred.dtype not in (jnp.float32, jnp.bfloat16):
        pred = pred.astype(jnp.float32)
    if mask.dtype not in (jnp.float32, jnp.bfloat16):
        mask = mask.astype(jnp.float32)

    p_flat = pred.reshape(-1)
    m_flat = mask.reshape(-1)

    # Lane alignment only (<=127 elements, and only when numel % 128 != 0).
    # Pred padded with a large negative logit -> sigmoid ~ 0, both focal terms
    # vanish, so no correction is needed.  Block/row alignment is handled
    # in-kernel (no full-array pad copies).
    lane_pad = (-total) % LANES
    if lane_pad:
        p_flat = jnp.pad(p_flat, (0, lane_pad), constant_values=NEG_FILL)
        m_flat = jnp.pad(m_flat, (0, lane_pad), constant_values=0)
    rows = (total + lane_pad) // LANES

    p2 = p_flat.reshape(rows, LANES)
    m2 = m_flat.reshape(rows, LANES)

    block_rows = rows if rows <= max_block_rows else max_block_rows
    nblk = _cdiv(rows, block_rows)

    # Always split the reduction across 2 TensorCores when there is more than
    # one block (wins on v7x, harmless sequential outer loop on v5e/v6e).
    # Odd block counts: clamp the index_map (in-bounds DMA of a duplicate
    # block) and let the in-kernel logical-row mask zero its contribution.
    num_splits = 2 if nblk >= 2 else 1
    steps = _cdiv(nblk, num_splits)

    acc_sub = SUBLANES if block_rows % SUBLANES == 0 else 1

    def in_map(c, i):
        return (jnp.minimum(c * steps + i, nblk - 1), 0)

    kernel = functools.partial(_loss_sums_kernel,
                               alpha=float(alpha), rows_total=rows)

    sums = pl.pallas_call(
        kernel,
        out_shape=jax.ShapeDtypeStruct((num_splits, 4, acc_sub, LANES),
                                       jnp.float32),
        grid_spec=pltpu.PrefetchScalarGridSpec(
            num_scalar_prefetch=0,
            grid=(num_splits, steps),
            in_specs=[
                pl.BlockSpec((block_rows, LANES), in_map),
                pl.BlockSpec((block_rows, LANES), in_map),
            ],
            out_specs=pl.BlockSpec((1, 4, acc_sub, LANES),
                                   lambda c, i: (c, 0, 0, 0)),
        ),
        compiler_params=pltpu.CompilerParams(
            # TODO(synk): verify on v7x that "parallel" shards this axis across
            # both TensorCores; switch to pltpu.CORE_PARALLEL if it does not.
            dimension_semantics=("parallel", "arbitrary"),
            vmem_limit_bytes=32 * 1024 * 1024,
        ),
    )(p2, m2)

    totals = jnp.sum(sums, axis=(0, 2, 3))             # (4,) scalars
    intersection = totals[0]
    sum_p = totals[1]
    sum_m = totals[2]
    focal_sum = totals[3]

    total_f = jnp.float32(total)

    # FocalLoss: denominator num_pos + num_neg == numel by construction.
    focal_loss = focal_sum / (total_f + 1e-7)

    # DiceLoss (global sums, as in the PyTorch module).
    dice = (2.0 * intersection + smooth) / (sum_p + sum_m + smooth)
    dice_loss = 1.0 - dice

    # MaskIoULoss (single global IoU vs every pred_iou entry, per the module).
    union = sum_p + sum_m - intersection
    iou = (intersection + 1e-7) / (union + 1e-7)
    iou_loss = jnp.mean((iou - pred_iou.astype(jnp.float32)) ** 2)

    return weight * focal_loss + dice_loss + iou_scale * iou_loss


def _reference(pred, mask, pred_iou, weight=20.0, iou_scale=1.0,
               smooth=1.0, alpha=0.25):
    """Pure-JAX mirror of the PyTorch FocalDiceloss_IoULoss module."""
    pred = pred.astype(jnp.float32)
    mask = mask.astype(jnp.float32)
    p = jax.nn.sigmoid(pred)
    inter = jnp.sum(p * mask)
    sum_p = jnp.sum(p)
    sum_m = jnp.sum(mask)
    num_pos = sum_m
    num_neg = pred.size - num_pos
    loss_pos = -alpha * mask * (1.0 - p) ** 2 * jnp.log(p + 1e-12)
    loss_neg = -(1.0 - alpha) * (1.0 - mask) * p ** 2 * jnp.log(1.0 - p + 1e-7)
    focal = (jnp.sum(loss_pos) + jnp.sum(loss_neg)) / (num_pos + num_neg + 1e-7)
    dice = 1.0 - (2.0 * inter + smooth) / (sum_p + sum_m + smooth)
    union = sum_p + sum_m - inter
    iou = (inter + 1e-7) / (union + 1e-7)
    iou_l = jnp.mean((iou - pred_iou.astype(jnp.float32)) ** 2)
    return weight * focal + dice + iou_scale * iou_l


if __name__ == "__main__":
    key = jax.random.PRNGKey(0)

    cases = [
        # (shape [B,1,H,W], pred dtype, max_block_rows override)
        ((2, 1, 16, 16), jnp.float32, MAX_BLOCK_ROWS),   # aligned, single block
        ((2, 1, 32, 32), jnp.bfloat16, MAX_BLOCK_ROWS),  # native-bf16 streaming
        ((2, 1, 36, 128), jnp.float32, 8),               # multi-block, odd nblk, 2-way split
        ((2, 1, 17, 19), jnp.float32, MAX_BLOCK_ROWS),   # unaligned numel (lane-pad path)
    ]

    for shape, dt, mbr in cases:
        key, k1, k2, k3 = jax.random.split(key, 4)
        pred = jax.random.normal(k1, shape, dtype=jnp.float32).astype(dt)
        mask = (jax.random.uniform(k2, shape) > 0.5).astype(jnp.float32)
        pred_iou = jax.random.uniform(k3, (shape[0], 1), dtype=jnp.float32)

        loss = focal_dice_iou_loss(pred, mask, pred_iou, max_block_rows=mbr)
        jax.block_until_ready(loss)

        ref = _reference(pred, mask, pred_iou)
        assert jnp.allclose(loss, ref, atol=1e-4, rtol=1e-4), (shape, dt, loss, ref)

    print("KERNEL_OK")
</pallas_src>

<mosaic_0001>
module attributes {stable_mosaic.version = 11 : i64} {
  func.func @_loss_sums_kernel(%arg0: i32, %arg1: i32, %arg2: memref<4x128xf32, #tpu.memory_space<vmem>>, %arg3: memref<4x128xf32, #tpu.memory_space<vmem>>, %arg4: memref<1x4x1x128xf32, #tpu.memory_space<vmem>>) attributes {dimension_semantics = [#tpu.dimension_semantics<parallel>, #tpu.dimension_semantics<arbitrary>], iteration_bounds = array<i64: 1, 1>, scalar_prefetch = 0 : i64, scratch_operands = 0 : i64, tpu.core_type = #tpu.core_type<tc>, window_params = [{transform_indices = @transform_0, window_bounds = array<i64: 4, 128>}, {transform_indices = @transform_1, window_bounds = array<i64: 4, 128>}, {transform_indices = @transform_2, window_bounds = array<i64: 1, 4, 1, 128>}]} {
    %c0_i32 = arith.constant 0 : i32
    %0 = arith.cmpi eq, %arg1, %c0_i32 : i32
    %1 = arith.extui %0 : i1 to i32
    %c0_i32_0 = arith.constant 0 : i32
    %2 = arith.cmpi ne, %1, %c0_i32_0 : i32
    scf.if %2 {
      %cst_22 = arith.constant 0.000000e+00 : f32
      %60 = vector.broadcast %cst_22 : f32 to vector<1x4x1x128xf32>
      %c0_23 = arith.constant 0 : index
      %c0_24 = arith.constant 0 : index
      %c0_25 = arith.constant 0 : index
      %c0_26 = arith.constant 0 : index
      %61 = vector.load %arg4[%c0_23, %c0_24, %c0_25, %c0_26] : memref<1x4x1x128xf32, #tpu.memory_space<vmem>>, vector<1x4x1x128xf32>
      tpu.vector_store %arg4[%c0_23, %c0_24, %c0_25, %c0_26], %60 {strides = array<i32>} : memref<1x4x1x128xf32, #tpu.memory_space<vmem>>, vector<1x4x1x128xf32>,
    } else {
    }
    %c0 = arith.constant 0 : index
    %c0_1 = arith.constant 0 : index
    %3 = vector.load %arg2[%c0, %c0_1] : memref<4x128xf32, #tpu.memory_space<vmem>>, vector<4x128xf32>
    %c0_2 = arith.constant 0 : index
    %c0_3 = arith.constant 0 : index
    %4 = vector.load %arg3[%c0_2, %c0_3] : memref<4x128xf32, #tpu.memory_space<vmem>>, vector<4x128xf32>
    %5 = math.absf %3 : vector<4x128xf32>
    %cst = arith.constant 0.000000e+00 : f32
    %6 = vector.broadcast %cst : f32 to vector<4x128xf32>
    %7 = arith.subf %6, %5 : vector<4x128xf32>
    %8 = math.exp %7 : vector<4x128xf32>
    %cst_4 = arith.constant 1.000000e+00 : f32
    %9 = vector.broadcast %cst_4 : f32 to vector<4x128xf32>
    %10 = arith.addf %9, %8 : vector<4x128xf32>
    %11 = math.log %10 : vector<4x128xf32>
    %cst_5 = arith.constant 1.000000e+00 : f32
    %12 = vector.broadcast %cst_5 : f32 to vector<4x128xf32>
    %13 = arith.divf %12, %10 : vector<4x128xf32>
    %cst_6 = arith.constant 0.000000e+00 : f32
    %14 = vector.broadcast %cst_6 : f32 to vector<4x128xf32>
    %15 = arith.cmpf oge, %3, %14 : vector<4x128xf32>
    %16 = arith.mulf %8, %13 : vector<4x128xf32>
    %17 = arith.select %15, %13, %16 : vector<4x128xi1>, vector<4x128xf32>
    %cst_7 = arith.constant 1.000000e+00 : f32
    %18 = vector.broadcast %cst_7 : f32 to vector<4x128xf32>
    %19 = arith.subf %18, %17 : vector<4x128xf32>
    %cst_8 = arith.constant 0.000000e+00 : f32
    %20 = vector.broadcast %cst_8 : f32 to vector<4x128xf32>
    %21 = arith.subf %20, %3 : vector<4x128xf32>
    %cst_9 = arith.constant 0.000000e+00 : f32
    %22 = vector.broadcast %cst_9 : f32 to vector<4x128xf32>
    %23 = arith.maximumf %21, %22 : vector<4x128xf32>
    %24 = arith.addf %23, %11 : vector<4x128xf32>
    %cst_10 = arith.constant 0.000000e+00 : f32
    %25 = vector.broadcast %cst_10 : f32 to vector<4x128xf32>
    %26 = arith.subf %25, %24 : vector<4x128xf32>
    %cst_11 = arith.constant -27.6310215 : f32
    %27 = vector.broadcast %cst_11 : f32 to vector<4x128xf32>
    %28 = arith.maximumf %26, %27 : vector<4x128xf32>
    %cst_12 = arith.constant 0.000000e+00 : f32
    %29 = vector.broadcast %cst_12 : f32 to vector<4x128xf32>
    %30 = arith.maximumf %3, %29 : vector<4x128xf32>
    %31 = arith.addf %30, %11 : vector<4x128xf32>
    %cst_13 = arith.constant 0.000000e+00 : f32
    %32 = vector.broadcast %cst_13 : f32 to vector<4x128xf32>
    %33 = arith.subf %32, %31 : vector<4x128xf32>
    %cst_14 = arith.constant -16.1180954 : f32
    %34 = vector.broadcast %cst_14 : f32 to vector<4x128xf32>
    %35 = arith.maximumf %33, %34 : vector<4x128xf32>
    %36 = arith.mulf %17, %4 : vector<4x128xf32>
    %cst_15 = arith.constant -2.500000e-01 : f32
    %37 = vector.broadcast %cst_15 : f32 to vector<4x128xf32>
    %38 = arith.mulf %37, %4 : vector<4x128xf32>
    %39 = arith.mulf %19, %19 : vector<4x128xf32>
    %40 = arith.mulf %38, %39 : vector<4x128xf32>
    %41 = arith.mulf %40, %28 : vector<4x128xf32>
    %cst_16 = arith.constant 1.000000e+00 : f32
    %42 = vector.broadcast %cst_16 : f32 to vector<4x128xf32>
    %43 = arith.subf %42, %4 : vector<4x128xf32>
    %cst_17 = arith.constant -7.500000e-01 : f32
    %44 = vector.broadcast %cst_17 : f32 to vector<4x128xf32>
    %45 = arith.mulf %44, %43 : vector<4x128xf32>
    %46 = arith.mulf %17, %17 : vector<4x128xf32>
    %47 = arith.mulf %45, %46 : vector<4x128xf32>
    %48 = arith.mulf %47, %35 : vector<4x128xf32>
    %49 = arith.addf %41, %48 : vector<4x128xf32>
    %c1_i32 = arith.constant 1 : i32
    %50 = arith.muli %arg0, %c1_i32 : i32
    %51 = arith.addi %50, %arg1 : i32
    %c4_i32 = arith.constant 4 : i32
    %52 = arith.muli %51, %c4_i32 : i32
    %c4_i32_18 = arith.constant 4 : i32
    %53 = arith.addi %52, %c4_i32_18 : i32
    %c4_i32_19 = arith.constant 4 : i32
    %54 = arith.cmpi sle, %53, %c4_i32_19 : i32
    %55 = arith.extui %54 : i1 to i32
    %c0_i32_20 = arith.constant 0 : i32
    %56 = arith.cmpi ne, %55, %c0_i32_20 : i32
    scf.if %56 {
      %c0_22 = arith.constant 0 : index
      %c0_23 = arith.constant 0 : index
      %c0_24 = arith.constant 0 : index
      %c0_25 = arith.constant 0 : index
      %60 = vector.load %arg4[%c0_22, %c0_23, %c0_24, %c0_25] : memref<1x4x1x128xf32, #tpu.memory_space<vmem>>, vector<1x1x1x128xf32>
      %61 = vector.shape_cast %60 : vector<1x1x1x128xf32> to vector<1x128xf32>
      %cst_26 = arith.constant dense<0.000000e+00> : vector<128xf32>
      %62 = vector.multi_reduction <add>, %36, %cst_26 [0] : vector<4x128xf32> to vector<128xf32>
      %63 = vector.shape_cast %62 : vector<128xf32> to vector<1x128xf32>
      %64 = arith.addf %61, %63 : vector<1x128xf32>
      %c0_27 = arith.constant 0 : index
      %c0_28 = arith.constant 0 : index
      %c0_29 = arith.constant 0 : index
      %c0_30 = arith.constant 0 : index
      %65 = vector.load %arg4[%c0_27, %c0_28, %c0_29, %c0_30] : memref<1x4x1x128xf32, #tpu.memory_space<vmem>>, vector<1x1x1x128xf32>
      %66 = vector.shape_cast %65 : vector<1x1x1x128xf32> to vector<1x128xf32>
      %67 = vector.shape_cast %64 : vector<1x128xf32> to vector<1x1x1x128xf32>
      tpu.vector_store %arg4[%c0_27, %c0_28, %c0_29, %c0_30], %67 {strides = array<i32>} : memref<1x4x1x128xf32, #tpu.memory_space<vmem>>, vector<1x1x1x128xf32>,
      %c0_31 = arith.constant 0 : index
      %c1 = arith.constant 1 : index
      %c0_32 = arith.constant 0 : index
      %c0_33 = arith.constant 0 : index
      %68 = vector.load %arg4[%c0_31, %c1, %c0_32, %c0_33] : memref<1x4x1x128xf32, #tpu.memory_space<vmem>>, vector<1x1x1x128xf32>
      %69 = vector.shape_cast %68 : vector<1x1x1x128xf32> to vector<1x128xf32>
      %cst_34 = arith.constant dense<0.000000e+00> : vector<128xf32>
      %70 = vector.multi_reduction <add>, %17, %cst_34 [0] : vector<4x128xf32> to vector<128xf32>
      %71 = vector.shape_cast %70 : vector<128xf32> to vector<1x128xf32>
      %72 = arith.addf %69, %71 : vector<1x128xf32>
      %c0_35 = arith.constant 0 : index
      %c1_36 = arith.constant 1 : index
      %c0_37 = arith.constant 0 : index
      %c0_38 = arith.constant 0 : index
      %73 = vector.load %arg4[%c0_35, %c1_36, %c0_37, %c0_38] : memref<1x4x1x128xf32, #tpu.memory_space<vmem>>, vector<1x1x1x128xf32>
      %74 = vector.shape_cast %73 : vector<1x1x1x128xf32> to vector<1x128xf32>
      %75 = vector.shape_cast %72 : vector<1x128xf32> to vector<1x1x1x128xf32>
      tpu.vector_store %arg4[%c0_35, %c1_36, %c0_37, %c0_38], %75 {strides = array<i32>} : memref<1x4x1x128xf32, #tpu.memory_space<vmem>>, vector<1x1x1x128xf32>,
      %c0_39 = arith.constant 0 : index
      %c2 = arith.constant 2 : index
      %c0_40 = arith.constant 0 : index
      %c0_41 = arith.constant 0 : index
      %76 = vector.load %arg4[%c0_39, %c2, %c0_40, %c0_41] : memref<1x4x1x128xf32, #tpu.memory_space<vmem>>, vector<1x1x1x128xf32>
      %77 = vector.shape_cast %76 : vector<1x1x1x128xf32> to vector<1x128xf32>
      %cst_42 = arith.constant dense<0.000000e+00> : vector<128xf32>
      %78 = vector.multi_reduction <add>, %4, %cst_42 [0] : vector<4x128xf32> to vector<128xf32>
      %79 = vector.shape_cast %78 : vector<128xf32> to vector<1x128xf32>
      %80 = arith.addf %77, %79 : vector<1x128xf32>
      %c0_43 = arith.constant 0 : index
      %c2_44 = arith.constant 2 : index
      %c0_45 = arith.constant 0 : index
      %c0_46 = arith.constant 0 : index
      %81 = vector.load %arg4[%c0_43, %c2_44, %c0_45, %c0_46] : memref<1x4x1x128xf32, #tpu.memory_space<vmem>>, vector<1x1x1x128xf32>
      %82 = vector.shape_cast %81 : vector<1x1x1x128xf32> to vector<1x128xf32>
      %83 = vector.shape_cast %80 : vector<1x128xf32> to vector<1x1x1x128xf32>
      tpu.vector_store %arg4[%c0_43, %c2_44, %c0_45, %c0_46], %83 {strides = array<i32>} : memref<1x4x1x128xf32, #tpu.memory_space<vmem>>, vector<1x1x1x128xf32>,
      %c0_47 = arith.constant 0 : index
      %c3 = arith.constant 3 : index
      %c0_48 = arith.constant 0 : index
      %c0_49 = arith.constant 0 : index
      %84 = vector.load %arg4[%c0_47, %c3, %c0_48, %c0_49] : memref<1x4x1x128xf32, #tpu.memory_space<vmem>>, vector<1x1x1x128xf32>
      %85 = vector.shape_cast %84 : vector<1x1x1x128xf32> to vector<1x128xf32>
      %cst_50 = arith.constant dense<0.000000e+00> : vector<128xf32>
      %86 = vector.multi_reduction <add>, %49, %cst_50 [0] : vector<4x128xf32> to vector<128xf32>
      %87 = vector.shape_cast %86 : vector<128xf32> to vector<1x128xf32>
      %88 = arith.addf %85, %87 : vector<1x128xf32>
      %c0_51 = arith.constant 0 : index
      %c3_52 = arith.constant 3 : index
      %c0_53 = arith.constant 0 : index
      %c0_54 = arith.constant 0 : index
      %89 = vector.load %arg4[%c0_51, %c3_52, %c0_53, %c0_54] : memref<1x4x1x128xf32, #tpu.memory_space<vmem>>, vector<1x1x1x128xf32>
      %90 = vector.shape_cast %89 : vector<1x1x1x128xf32> to vector<1x128xf32>
      %91 = vector.shape_cast %88 : vector<1x128xf32> to vector<1x1x1x128xf32>
      tpu.vector_store %arg4[%c0_51, %c3_52, %c0_53, %c0_54], %91 {strides = array<i32>} : memref<1x4x1x128xf32, #tpu.memory_space<vmem>>, vector<1x1x1x128xf32>,
    } else {
    }
    %true = arith.constant true
    %57 = arith.xori %54, %true : i1
    %58 = arith.extui %57 : i1 to i32
    %c0_i32_21 = arith.constant 0 : i32
    %59 = arith.cmpi ne, %58, %c0_i32_21 : i32
    scf.if %59 {
      %60 = tpu.iota {dimensions = array<i32: 0>} : vector<4x128xi32>
      %61 = vector.broadcast %52 : i32 to vector<4x128xi32>
      %62 = arith.addi %61, %60 : vector<4x128xi32>
      %c4_i32_22 = arith.constant 4 : i32
      %63 = vector.broadcast %c4_i32_22 : i32 to vector<4x128xi32>
      %64 = arith.cmpi slt, %62, %63 : vector<4x128xi32>
      %cst_23 = arith.constant 0.000000e+00 : f32
      %65 = vector.broadcast %cst_23 : f32 to vector<4x128xf32>
      %66 = arith.select %64, %36, %65 : vector<4x128xi1>, vector<4x128xf32>
      %67 = arith.select %64, %17, %65 : vector<4x128xi1>, vector<4x128xf32>
      %68 = arith.select %64, %4, %65 : vector<4x128xi1>, vector<4x128xf32>
      %69 = arith.select %64, %49, %65 : vector<4x128xi1>, vector<4x128xf32>
      %c0_24 = arith.constant 0 : index
      %c0_25 = arith.constant 0 : index
      %c0_26 = arith.constant 0 : index
      %c0_27 = arith.constant 0 : index
      %70 = vector.load %arg4[%c0_24, %c0_25, %c0_26, %c0_27] : memref<1x4x1x128xf32, #tpu.memory_space<vmem>>, vector<1x1x1x128xf32>
      %71 = vector.shape_cast %70 : vector<1x1x1x128xf32> to vector<1x128xf32>
      %cst_28 = arith.constant dense<0.000000e+00> : vector<128xf32>
      %72 = vector.multi_reduction <add>, %66, %cst_28 [0] : vector<4x128xf32> to vector<128xf32>
      %73 = vector.shape_cast %72 : vector<128xf32> to vector<1x128xf32>
      %74 = arith.addf %71, %73 : vector<1x128xf32>
      %c0_29 = arith.constant 0 : index
      %c0_30 = arith.constant 0 : index
      %c0_31 = arith.constant 0 : index
      %c0_32 = arith.constant 0 : index
      %75 = vector.load %arg4[%c0_29, %c0_30, %c0_31, %c0_32] : memref<1x4x1x128xf32, #tpu.memory_space<vmem>>, vector<1x1x1x128xf32>
      %76 = vector.shape_cast %75 : vector<1x1x1x128xf32> to vector<1x128xf32>
      %77 = vector.shape_cast %74 : vector<1x128xf32> to vector<1x1x1x128xf32>
      tpu.vector_store %arg4[%c0_29, %c0_30, %c0_31, %c0_32], %77 {strides = array<i32>} : memref<1x4x1x128xf32, #tpu.memory_space<vmem>>, vector<1x1x1x128xf32>,
      %c0_33 = arith.constant 0 : index
      %c1 = arith.constant 1 : index
      %c0_34 = arith.constant 0 : index
      %c0_35 = arith.constant 0 : index
      %78 = vector.load %arg4[%c0_33, %c1, %c0_34, %c0_35] : memref<1x4x1x128xf32, #tpu.memory_space<vmem>>, vector<1x1x1x128xf32>
      %79 = vector.shape_cast %78 : vector<1x1x1x128xf32> to vector<1x128xf32>
      %cst_36 = arith.constant dense<0.000000e+00> : vector<128xf32>
      %80 = vector.multi_reduction <add>, %67, %cst_36 [0] : vector<4x128xf32> to vector<128xf32>
      %81 = vector.shape_cast %80 : vector<128xf32> to vector<1x128xf32>
      %82 = arith.addf %79, %81 : vector<1x128xf32>
      %c0_37 = arith.constant 0 : index
      %c1_38 = arith.constant 1 : index
      %c0_39 = arith.constant 0 : index
      %c0_40 = arith.constant 0 : index
      %83 = vector.load %arg4[%c0_37, %c1_38, %c0_39, %c0_40] : memref<1x4x1x128xf32, #tpu.memory_space<vmem>>, vector<1x1x1x128xf32>
      %84 = vector.shape_cast %83 : vector<1x1x1x128xf32> to vector<1x128xf32>
      %85 = vector.shape_cast %82 : vector<1x128xf32> to vector<1x1x1x128xf32>
      tpu.vector_store %arg4[%c0_37, %c1_38, %c0_39, %c0_40], %85 {strides = array<i32>} : memref<1x4x1x128xf32, #tpu.memory_space<vmem>>, vector<1x1x1x128xf32>,
      %c0_41 = arith.constant 0 : index
      %c2 = arith.constant 2 : index
      %c0_42 = arith.constant 0 : index
      %c0_43 = arith.constant 0 : index
      %86 = vector.load %arg4[%c0_41, %c2, %c0_42, %c0_43] : memref<1x4x1x128xf32, #tpu.memory_space<vmem>>, vector<1x1x1x128xf32>
      %87 = vector.shape_cast %86 : vector<1x1x1x128xf32> to vector<1x128xf32>
      %cst_44 = arith.constant dense<0.000000e+00> : vector<128xf32>
      %88 = vector.multi_reduction <add>, %68, %cst_44 [0] : vector<4x128xf32> to vector<128xf32>
      %89 = vector.shape_cast %88 : vector<128xf32> to vector<1x128xf32>
      %90 = arith.addf %87, %89 : vector<1x128xf32>
      %c0_45 = arith.constant 0 : index
      %c2_46 = arith.constant 2 : index
      %c0_47 = arith.constant 0 : index
      %c0_48 = arith.constant 0 : index
      %91 = vector.load %arg4[%c0_45, %c2_46, %c0_47, %c0_48] : memref<1x4x1x128xf32, #tpu.memory_space<vmem>>, vector<1x1x1x128xf32>
      %92 = vector.shape_cast %91 : vector<1x1x1x128xf32> to vector<1x128xf32>
      %93 = vector.shape_cast %90 : vector<1x128xf32> to vector<1x1x1x128xf32>
      tpu.vector_store %arg4[%c0_45, %c2_46, %c0_47, %c0_48], %93 {strides = array<i32>} : memref<1x4x1x128xf32, #tpu.memory_space<vmem>>, vector<1x1x1x128xf32>,
      %c0_49 = arith.constant 0 : index
      %c3 = arith.constant 3 : index
      %c0_50 = arith.constant 0 : index
      %c0_51 = arith.constant 0 : index
      %94 = vector.load %arg4[%c0_49, %c3, %c0_50, %c0_51] : memref<1x4x1x128xf32, #tpu.memory_space<vmem>>, vector<1x1x1x128xf32>
      %95 = vector.shape_cast %94 : vector<1x1x1x128xf32> to vector<1x128xf32>
      %cst_52 = arith.constant dense<0.000000e+00> : vector<128xf32>
      %96 = vector.multi_reduction <add>, %69, %cst_52 [0] : vector<4x128xf32> to vector<128xf32>
      %97 = vector.shape_cast %96 : vector<128xf32> to vector<1x128xf32>
      %98 = arith.addf %95, %97 : vector<1x128xf32>
      %c0_53 = arith.constant 0 : index
      %c3_54 = arith.constant 3 : index
      %c0_55 = arith.constant 0 : index
      %c0_56 = arith.constant 0 : index
      %99 = vector.load %arg4[%c0_53, %c3_54, %c0_55, %c0_56] : memref<1x4x1x128xf32, #tpu.memory_space<vmem>>, vector<1x1x1x128xf32>
      %100 = vector.shape_cast %99 : vector<1x1x1x128xf32> to vector<1x128xf32>
      %101 = vector.shape_cast %98 : vector<1x128xf32> to vector<1x1x1x128xf32>
      tpu.vector_store %arg4[%c0_53, %c3_54, %c0_55, %c0_56], %101 {strides = array<i32>} : memref<1x4x1x128xf32, #tpu.memory_space<vmem>>, vector<1x1x1x128xf32>,
    } else {
    }
    return
  }
  func.func @transform_0(%arg0: i32, %arg1: i32) -> (i32, i32) {
    %c1_i32 = arith.constant 1 : i32
    %0 = arith.muli %arg0, %c1_i32 : i32
    %1 = arith.addi %0, %arg1 : i32
    %c0_i32 = arith.constant 0 : i32
    %2 = arith.minsi %1, %c0_i32 : i32
    %c0_i32_0 = arith.constant 0 : i32
    %c0_i32_1 = arith.constant 0 : i32
    return %2, %c0_i32_0 : i32, i32
  }
  func.func @transform_1(%arg0: i32, %arg1: i32) -> (i32, i32) {
    %c1_i32 = arith.constant 1 : i32
    %0 = arith.muli %arg0, %c1_i32 : i32
    %1 = arith.addi %0, %arg1 : i32
    %c0_i32 = arith.constant 0 : i32
    %2 = arith.minsi %1, %c0_i32 : i32
    %c0_i32_0 = arith.constant 0 : i32
    %c0_i32_1 = arith.constant 0 : i32
    return %2, %c0_i32_0 : i32, i32
  }
  func.func @transform_2(%arg0: i32, %arg1: i32) -> (i32, i32, i32, i32) {
    %c0_i32 = arith.constant 0 : i32
    %c0_i32_0 = arith.constant 0 : i32
    %c0_i32_1 = arith.constant 0 : i32
    %c0_i32_2 = arith.constant 0 : i32
    return %arg0, %c0_i32, %c0_i32_0, %c0_i32_1 : i32, i32, i32, i32
  }
}

</mosaic_0001>

<llo_original>
// kernel: tpu_custom_call.1
$region0: #{tpu_custom_call.1}
  #allocation0 [shape = 'u32[]', space=smem, size = 0x4, offset = 0x4, fixed_abs, tag = 'smem constant byte address 0x4 - core index']
  #allocation1 [shape = 'u32[72,128]{1,0:T(1,128)}', space=vmem, size = 0x9000, scoped, tag = 'internal scratch']
  %s0 = inlined_call_operand.hbm [shape: f32[4,128], index: 0, kind: input, shape index: {}]
  %s1 = inlined_call_operand.hbm [shape: f32[4,128], index: 1, kind: input, shape index: {}]
  %s2 = inlined_call_operand.hbm [shape: f32[1,4,1,128], index: 2, kind: output, shape index: {}]
  %s3 = sld [smem:[#allocation0]]
  $region38: #{tpu_custom_call.1} parent=0
    _
  %s5 = ssub.s32 1, %s3
  %s6 = scalar_select 0, %s5, %s3
  $region1: #{tpu_custom_call.1} parent=0
    #allocation2 [shape = 'u8[2048]{0}', space=vmem, size = 0x800, scoped, tag = 'input window, operand 0, single buffered']
    #allocation3 [shape = 's32[1]{0}', space=sflag, size = 0x4, scoped, tag = 'scoped memory for tpu_custom_call.1']
    #allocation4 [shape = 's32[1]{0}', space=sflag, size = 0x4, scoped, tag = 'scoped memory for tpu_custom_call.1']
    #allocation5 [shape = 'u8[2048]{0}', space=vmem, size = 0x800, scoped, tag = 'input window, operand 1, single buffered']
    #allocation6 [shape = 's32[1]{0}', space=sflag, size = 0x4, scoped, tag = 'scoped memory for tpu_custom_call.1']
    #allocation7 [shape = 'u8[2048]{0}', space=vmem, size = 0x800, scoped, tag = 'output window, operand 0, single buffered']
    %7 = vsyncpa [#allocation3], 0
    %8 = vsyncpa [#allocation6], 0
    %9 = vsyncpa [#allocation4], 0
    // Predicated region
    $region2: #{tpu_custom_call.1} parent=1 // pred_check
      _
    $region3: #{tpu_custom_call.1} parent=1 // pred_check_branch
      %11 = sbr.rel (0) target = $region5
    $region4: #{tpu_custom_call.1} parent=1 // pred_region
      %s12 = sadd.s32 0, 0
      %p13 = scmp.lt.s32.totalorder %s12, 0
      %s14 = scalar_select %p13, %s12, 0
      %16 = vsyncadd [#allocation3], 0
      %s17 = smul.addr %s14, 4
      %s18 = scalar_lea.hbm %s0, %s17
      %s20 = sshll.u32 %s18, 4
      %s21 = int_to_ptr.hbm [resolvable:$true] %s20
      %s22 = sshll.u32 [#allocation2], 4
      %s23 = int_to_ptr.vmem [resolvable:$true] %s22
      %25 = dma.hbm_to_vmem [thread:$0]  %s21, 64, %s23, [#allocation3]
    $region5: #{tpu_custom_call.1} parent=1 // pred_fallthru
      _
    // Predicated region
    $region6: #{tpu_custom_call.1} parent=1 // pred_check
      _
    $region7: #{tpu_custom_call.1} parent=1 // pred_check_branch
      %27 = sbr.rel (0) target = $region9
    $region8: #{tpu_custom_call.1} parent=1 // pred_region
      %s28 = sadd.s32 0, 0
      %p29 = scmp.lt.s32.totalorder %s28, 0
      %s30 = scalar_select %p29, %s28, 0
      %32 = vsyncadd [#allocation6], 0
      %s33 = smul.addr %s30, 4
      %s34 = scalar_lea.hbm %s1, %s33
      %s36 = sshll.u32 %s34, 4
      %s37 = int_to_ptr.hbm [resolvable:$true] %s36
      %s38 = sshll.u32 [#allocation5], 4
      %s39 = int_to_ptr.vmem [resolvable:$true] %s38
      %41 = dma.hbm_to_vmem [thread:$0]  %s37, 64, %s39, [#allocation6]
    $region9: #{tpu_custom_call.1} parent=1 // pred_fallthru
      _
    // Predicated region
    $region10: #{tpu_custom_call.1} parent=1 // pred_check
      _
    $region11: #{tpu_custom_call.1} parent=1 // pred_check_branch
      %43 = sbr.rel (0) target = $region13
    $region12: #{tpu_custom_call.1} parent=1 // pred_region
      %45 = dma.done [#allocation3], 64
    $region13: #{tpu_custom_call.1} parent=1 // pred_fallthru
      _
    // Predicated region
    $region14: #{tpu_custom_call.1} parent=1 // pred_check
      _
    $region15: #{tpu_custom_call.1} parent=1 // pred_check_branch
      %47 = sbr.rel (0) target = $region17
    $region16: #{tpu_custom_call.1} parent=1 // pred_region
      %49 = dma.done [#allocation6], 64
    $region17: #{tpu_custom_call.1} parent=1 // pred_fallthru
      _
    %s50 = sadd.s32 0, 0
    %p51 = scmp.lt.s32.totalorder %s50, 0
    %s52 = scalar_select %p51, %s50, 0
    %s53 = sadd.s32 0, 0
    %p54 = scmp.lt.s32.totalorder %s53, 0
    %s55 = scalar_select %p54, %s53, 0
    %p56 = scmp.eq.s32.totalorder 0, 0
    // Predicated region
    $region18: #{tpu_custom_call.1} parent=1 // pred_check
      %p57 = pneg %p56
    $region19: #{tpu_custom_call.1} parent=1 // pred_check_branch
      %59 = sbr.rel (%p57) target = $region21
    $region20: #{tpu_custom_call.1} parent=1 // pred_region
      %60 = vst [vmem:[#allocation7] sm:$0x1] 0.0
      %61 = vst [vmem:[#allocation7 + $0x1] sm:$0x1] 0.0
      %62 = vst [vmem:[#allocation7 + $0x2] sm:$0x1] 0.0
      %63 = vst [vmem:[#allocation7 + $0x3] sm:$0x1] 0.0
    $region21: #{tpu_custom_call.1} parent=1 // pred_fallthru
      _
    %v64 = vld [vmem:[#allocation2] sm:$0xf]
    %v65 = vld [vmem:[#allocation5] sm:$0xf]
    %v66 = vand.u32 2147483647, %v64
    %v67 = vsub.f32 0.0, %v66
    %v68 = vmul.f32 %v67, 1.442695
    %v69 = vpow.pop %v68
    %v70 = vadd.f32 %v69, 1.0
    %v71 = vlog2.pop %v70
    %v72 = vmul.f32 %v71, 0.6931472
    %v73 = vrcp.pop %v70
    %v74 = vmul.f32 %v70, %v73
    %v75 = vsub.f32 1.0, %v74
    %v76 = vmul.f32 %v73, %v75
    %v77 = vadd.f32 %v73, %v76
    %vm78 = vweird.f32 %v70
    %vm79 = vweird.f32 %v73
    %vm80 = vmor %vm78, %vm79
    %v81 = vsel %vm80, %v73, %v77
    %v82 = vand.u32 2147483647, %v70
    %vm83 = vcmp.eq.f32.partialorder %v82, 8.507059e+37
    %v84 = vand.u32 %v70, 2147483648
    %v85 = vor.u32 1.1754944e-38, %v84
    %v86 = vsel %vm83, %v85, %v81
    %v87 = vmul.f32 1.0, %v86
    %vm88 = vcmp.ge.f32.partialorder %v64, 0.0
    %v89 = vmul.f32 %v69, %v87
    %v90 = vsel %vm88, %v87, %v89
    %v91 = vsub.f32 1.0, %v90
    %v92 = vsub.f32 0.0, %v64
    %v93 = vmax.f32 %v92, 0.0
    %v94 = vadd.f32 %v93, %v72
    %v95 = vsub.f32 0.0, %v94
    %v96 = vmax.f32 %v95, -27.631021
    %v97 = vmax.f32 %v64, 0.0
    %v98 = vadd.f32 %v97, %v72
    %v99 = vsub.f32 0.0, %v98
    %v100 = vmax.f32 %v99, -16.118095
    %v101 = vmul.f32 %v90, %v65
    %v102 = vmul.f32 %v65, -0.25
    %v103 = vmul.f32 %v91, %v91
    %v104 = vmul.f32 %v102, %v103
    %v105 = vmul.f32 %v104, %v96
    %v106 = vsub.f32 1.0, %v65
    %v107 = vmul.f32 %v106, -0.75
    %v108 = vmul.f32 %v90, %v90
    %v109 = vmul.f32 %v107, %v108
    %v110 = vmul.f32 %v109, %v100
    %v111 = vadd.f32 %v105, %v110
    %s112 = sadd.s32 0, 0
    %s113 = smul.u32 %s112, 4
    %s114 = sadd.s32 %s113, 4
    %p115 = scmp.le.s32.totalorder %s114, 4
    // Predicated region
    $region22: #{tpu_custom_call.1} parent=1 // pred_check
      %p116 = pneg %p115
    $region23: #{tpu_custom_call.1} parent=1 // pred_check_branch
      %118 = sbr.rel (%p116) target = $region25
    $region24: #{tpu_custom_call.1} parent=1 // pred_region
      %v119 = vld [vmem:[#allocation7] sm:$0x1]
      %vm120 = vcmask 1043456
      %v121 = vsel %vm120, %v101, 0.0
      %v122 = vrot.slane %v121, 4
      %v123 = vadd.f32 %v121, %v122
      %v124 = vrot.slane %v123, 2
      %v125 = vadd.f32 %v123, %v124
      %v126 = vrot.slane %v125, 1
      %v127 = vadd.f32 %v125, %v126
      %v128 = vadd.f32 %v119, %v127
      %129 = vst [vmem:[#allocation7] sm:$0x1] %v128
      %s130 = scalar_lea.vmem [#allocation7], 1
      %v131 = vld [vmem:[%s130] sm:$0x1]
      %v132 = vsel %vm120, %v90, 0.0
      %v133 = vrot.slane %v132, 4
      %v134 = vadd.f32 %v132, %v133
      %v135 = vrot.slane %v134, 2
      %v136 = vadd.f32 %v134, %v135
      %v137 = vrot.slane %v136, 1
      %v138 = vadd.f32 %v136, %v137
      %v139 = vadd.f32 %v131, %v138
      %140 = vst [vmem:[%s130] sm:$0x1] %v139
      %s141 = scalar_lea.vmem [#allocation7], 2
      %v142 = vld [vmem:[%s141] sm:$0x1]
      %v143 = vsel %vm120, %v65, 0.0
      %v144 = vrot.slane %v143, 4
      %v145 = vadd.f32 %v143, %v144
      %v146 = vrot.slane %v145, 2
      %v147 = vadd.f32 %v145, %v146
      %v148 = vrot.slane %v147, 1
      %v149 = vadd.f32 %v147, %v148
      %v150 = vadd.f32 %v142, %v149
      %151 = vst [vmem:[%s141] sm:$0x1] %v150
      %s152 = scalar_lea.vmem [#allocation7], 3
      %v153 = vld [vmem:[%s152] sm:$0x1]
      %v154 = vsel %vm120, %v111, 0.0
      %v155 = vrot.slane %v154, 4
      %v156 = vadd.f32 %v154, %v155
      %v157 = vrot.slane %v156, 2
      %v158 = vadd.f32 %v156, %v157
      %v159 = vrot.slane %v158, 1
      %v160 = vadd.f32 %v158, %v159
      %v161 = vadd.f32 %v153, %v160
      %162 = vst [vmem:[%s152] sm:$0x1] %v161
    $region25: #{tpu_custom_call.1} parent=1 // pred_fallthru
      _
    %p163 = scmp.gt.s32.totalorder %s114, 4
    // Predicated region
    $region26: #{tpu_custom_call.1} parent=1 // pred_check
      %p164 = pneg %p163
    $region27: #{tpu_custom_call.1} parent=1 // pred_check_branch
      %166 = sbr.rel (%p164) target = $region29
    $region28: #{tpu_custom_call.1} parent=1 // pred_region
      %v167 = vlaneseq
      %v168 = vshrl.u32 %v167, 7
      %v169 = vstv %s113
      %v170 = vadd.s32 %v169, %v168
      %vm171 = vcmp.lt.s32.totalorder %v170, 4
      %v172 = vsel %vm171, %v101, 0.0
      %v173 = vsel %vm171, %v90, 0.0
      %v174 = vsel %vm171, %v65, 0.0
      %v175 = vsel %vm171, %v111, 0.0
      %v176 = vld [vmem:[#allocation7] sm:$0x1]
      %vm177 = vcmask 1043456
      %v178 = vsel %vm177, %v172, 0.0
      %v179 = vrot.slane %v178, 4
      %v180 = vadd.f32 %v178, %v179
      %v181 = vrot.slane %v180, 2
      %v182 = vadd.f32 %v180, %v181
      %v183 = vrot.slane %v182, 1
      %v184 = vadd.f32 %v182, %v183
      %v185 = vadd.f32 %v176, %v184
      %186 = vst [vmem:[#allocation7] sm:$0x1] %v185
      %s187 = scalar_lea.vmem [#allocation7], 1
      %v188 = vld [vmem:[%s187] sm:$0x1]
      %v189 = vsel %vm177, %v173, 0.0
      %v190 = vrot.slane %v189, 4
      %v191 = vadd.f32 %v189, %v190
      %v192 = vrot.slane %v191, 2
      %v193 = vadd.f32 %v191, %v192
      %v194 = vrot.slane %v193, 1
      %v195 = vadd.f32 %v193, %v194
      %v196 = vadd.f32 %v188, %v195
      %197 = vst [vmem:[%s187] sm:$0x1] %v196
      %s198 = scalar_lea.vmem [#allocation7], 2
      %v199 = vld [vmem:[%s198] sm:$0x1]
      %v200 = vsel %vm177, %v174, 0.0
      %v201 = vrot.slane %v200, 4
      %v202 = vadd.f32 %v200, %v201
      %v203 = vrot.slane %v202, 2
      %v204 = vadd.f32 %v202, %v203
      %v205 = vrot.slane %v204, 1
      %v206 = vadd.f32 %v204, %v205
      %v207 = vadd.f32 %v199, %v206
      %208 = vst [vmem:[%s198] sm:$0x1] %v207
      %s209 = scalar_lea.vmem [#allocation7], 3
      %v210 = vld [vmem:[%s209] sm:$0x1]
      %v211 = vsel %vm177, %v175, 0.0
      %v212 = vrot.slane %v211, 4
      %v213 = vadd.f32 %v211, %v212
      %v214 = vrot.slane %v213, 2
      %v215 = vadd.f32 %v213, %v214
      %v216 = vrot.slane %v215, 1
      %v217 = vadd.f32 %v215, %v216
      %v218 = vadd.f32 %v210, %v217
      %219 = vst [vmem:[%s209] sm:$0x1] %v218
    $region29: #{tpu_custom_call.1} parent=1 // pred_fallthru
      _
    // Predicated region
    $region30: #{tpu_custom_call.1} parent=1 // pred_check
      _
    $region31: #{tpu_custom_call.1} parent=1 // pred_check_branch
      %221 = sbr.rel (0) target = $region33
    $region32: #{tpu_custom_call.1} parent=1 // pred_region
      %223 = vsyncadd [#allocation4], 0
      %s224 = sshll.u32 [#allocation7], 4
      %s225 = int_to_ptr.vmem [resolvable:$true] %s224
      %s226 = sshll.u32 %s2, 4
      %s227 = int_to_ptr.hbm [resolvable:$true] %s226
      %232 = dma.vmem_to_hbm [thread:$0]  %s225, 64, %s227, [#allocation4], 16, 16, 1
    $region33: #{tpu_custom_call.1} parent=1 // pred_fallthru
      _
    // Predicated region
    $region34: #{tpu_custom_call.1} parent=1 // pred_check
      _
    $region35: #{tpu_custom_call.1} parent=1 // pred_check_branch
      %234 = sbr.rel (0) target = $region37
    $region36: #{tpu_custom_call.1} parent=1 // pred_region
      %236 = dma.done [#allocation4], 64
    $region37: #{tpu_custom_call.1} parent=1 // pred_fallthru
      _
    %237 = vsyncpa [#allocation3], 1
    %238 = vsyncpa [#allocation6], 1
    %239 = vsyncpa [#allocation4], 1

</llo_original>
